<compile_context>
chip_gen: v6e
topology: v6e:2x2x1
jax: 0.10.0
libtpu: 0.0.40
codegen_flags: <defaults>
</compile_context>

<pallas_src>
import jax
import jax.numpy as jnp
from jax import lax
from jax.experimental import pallas as pl
from jax.experimental.pallas import tpu as pltpu


def _round_up(x, m):
    return ((x + m - 1) // m) * m


def _vmem_capacity_bytes(default=64 * 1024 * 1024):
    """Trace-time VMEM capacity query; falls back to a safe (v7x-sized) default."""
    try:
        info = pltpu.get_tpu_info()
        cap = getattr(info, "vmem_capacity_bytes", None)
        if cap:
            return int(cap)
    except Exception:
        pass
    return default


def _make_tv_kernel(TB, TA, N, A):
    """Kernel over (TB, TA, Bd) tiles; writes a (1, 2) SMEM partial-sum block."""
    ragged_batch = (N % TB) != 0
    ragged_rows = (A % TA) != 0

    def _tv_kernel(out_ref, gt_ref, sums_ref):
        # Single subtract in the input dtype; both gradients are taken on d.
        d = out_ref[...] - gt_ref[...]                         # (TB, TA, Bd)

        if ragged_batch:
            # Last batch chunk reads past N -> zero the garbage slabs.
            b_idx = (pl.program_id(0) * TB
                     + lax.broadcasted_iota(jnp.int32, d.shape, 0))
            d = jnp.where(b_idx < N, d, jnp.zeros_like(d))
        if ragged_rows:
            # Last row tile reads past A -> zero the garbage rows.
            r_idx = (pl.program_id(1) * TA
                     + lax.broadcasted_iota(jnp.int32, d.shape, 1))
            d = jnp.where(r_idx < A, d, jnp.zeros_like(d))

        # x (lane) direction and y (sublane) direction differences on d.
        dx = jnp.abs(d[:, :, 1:] - d[:, :, :-1])               # (TB, TA, Bd-1)
        dy = jnp.abs(d[:, 1:, :] - d[:, :-1, :])               # (TB, TA-1, Bd)
        if ragged_rows:
            # Drop y-pairs whose upper row lies past the true height A.
            pair_idx = (pl.program_id(1) * TA + 1
                        + lax.broadcasted_iota(jnp.int32, dy.shape, 1))
            dy = jnp.where(pair_idx < A, dy, jnp.zeros_like(dy))

        # Two-stage reduction: per-lane partials with f32 accumulation (VPU),
        # then one cross-lane reduce (XLU) per direction.
        lane_x = jnp.sum(dx, axis=(0, 1), dtype=jnp.float32)
        lane_y = jnp.sum(dy, axis=(0, 1), dtype=jnp.float32)
        sums_ref[0, 0] = jnp.sum(lane_x)
        sums_ref[0, 1] = jnp.sum(lane_y)

    return _tv_kernel


def tv_loss(out, gt, weight=1.0, target_tile_bytes=None, vmem_limit_bytes=None):
    """TVLoss.forward: weight * (L1_mean(grad_x_out - grad_x_gt) + L1_mean(grad_y_...))."""
    B, C, H, W = out.shape
    N = B * C
    A, Bd = H, W
    out_r = out.reshape(N, A, Bd)      # free reshape, no transpose, no copy
    gt_r = gt.reshape(N, A, Bd)
    itemsize = jnp.dtype(out_r.dtype).itemsize

    # ---- generation-aware VMEM budgeting -------------------------------------
    if vmem_limit_bytes is None:
        cap = _vmem_capacity_bytes()
        # Leave headroom below physical capacity: ~48 MiB on v7x, ~96 MiB on v5e/v6e.
        vmem_limit_bytes = max(32 * 1024 * 1024,
                               min(cap - 16 * 1024 * 1024, 96 * 1024 * 1024))
    if target_tile_bytes is None:
        # Per-input tile budget: 2 inputs x 2 pipeline buffers + ~2 tiles of
        # elementwise temporaries ~= 6 tiles resident; cap at 8 MiB per input.
        target_tile_bytes = min(vmem_limit_bytes // 6, 8 * 1024 * 1024)

    # ---- tile sizing from the PADDED (8,128) VMEM footprint ------------------
    padded_row_bytes = _round_up(Bd, 128) * itemsize
    padded_slab_bytes = _round_up(A, 8) * padded_row_bytes

    if padded_slab_bytes <= target_tile_bytes:
        # Batch several full (A, Bd) slabs per grid step.
        TA = A
        TB = int(max(1, min(N, target_tile_bytes // padded_slab_bytes)))
    else:
        # A single slab exceeds the budget: tile its rows (sublane axis);
        # seam pairs between row tiles are added back in the wrapper.
        TB = 1
        TA = int(min(A, max(8, (target_tile_bytes // padded_row_bytes) // 8 * 8)))

    num_chunks = -(-N // TB)
    num_row_tiles = -(-A // TA)
    # Ragged tails (N % TB, A % TA) are handled by in-kernel masking: no
    # zero-pad copies of the inputs -> no extra HBM pass.

    kernel = _make_tv_kernel(TB, TA, N, A)

    partials = pl.pallas_call(
        kernel,
        out_shape=jax.ShapeDtypeStruct((num_chunks * num_row_tiles, 2), jnp.float32),
        grid=(num_chunks, num_row_tiles),
        in_specs=[
            pl.BlockSpec((TB, TA, Bd), lambda i, r: (i, r, 0)),
            pl.BlockSpec((TB, TA, Bd), lambda i, r: (i, r, 0)),
        ],
        out_specs=pl.BlockSpec((1, 2), lambda i, r: (i * num_row_tiles + r, 0),
                               memory_space=pltpu.SMEM),
        compiler_params=pltpu.CompilerParams(
            dimension_semantics=("parallel", "parallel"),
            vmem_limit_bytes=int(vmem_limit_bytes),
        ),
        cost_estimate=pl.CostEstimate(
            flops=int(7 * N * A * Bd),
            transcendentals=0,
            bytes_accessed=int(2 * N * A * Bd * itemsize),
        ),
    )(out_r, gt_r)

    sums = jnp.sum(partials, axis=0)          # (2,) = [lane/x, sublane/y]
    sum_x = sums[0]
    sum_y = sums[1]

    # y-gradient pairs straddling row-tile boundaries (tiny strided read; only
    # present when a single slab had to be split across row tiles).
    if num_row_tiles > 1:
        seam = jnp.arange(TA, A, TA)
        d_hi = out_r[:, seam, :] - gt_r[:, seam, :]
        d_lo = out_r[:, seam - 1, :] - gt_r[:, seam - 1, :]
        sum_y = sum_y + jnp.sum(jnp.abs(d_hi - d_lo).astype(jnp.float32))

    # L1Loss(reduction='mean') denominators: N*H*(W-1) for x, N*(H-1)*W for y.
    loss_x = sum_x / jnp.float32(N * H * (W - 1))
    loss_y = sum_y / jnp.float32(N * (H - 1) * W)
    return jnp.float32(weight) * (loss_x + loss_y)


def _tv_loss_ref(out, gt, weight=1.0):
    gox = out[:, :, :, 1:] - out[:, :, :, :-1]
    goy = out[:, :, 1:, :] - out[:, :, :-1, :]
    ggx = gt[:, :, :, 1:] - gt[:, :, :, :-1]
    ggy = gt[:, :, 1:, :] - gt[:, :, :-1, :]
    lx = jnp.mean(jnp.abs(gox - ggx))
    ly = jnp.mean(jnp.abs(goy - ggy))
    return weight * (lx + ly)


if __name__ == "__main__":
    key = jax.random.PRNGKey(0)
    k1, k2, k3, k4 = jax.random.split(key, 4)

    # Primary shape implied by the module: (batch=2, channels=4, 16x16 maps).
    B, C, H, W = 2, 4, 16, 16
    out = jax.random.normal(k1, (B, C, H, W), dtype=jnp.float32)
    gt = jax.random.normal(k2, (B, C, H, W), dtype=jnp.float32)
    weight = 1.0  # TVLoss.__init__ default

    loss = jax.block_until_ready(tv_loss(out, gt, weight=weight))
    ref = _tv_loss_ref(out, gt, weight=weight)
    assert jnp.allclose(loss, ref, rtol=1e-5, atol=1e-5), (loss, ref)

    # Exercise the ragged-batch path (N % TB != 0) via a forced small tile budget.
    out2 = jax.random.normal(k3, (3, 1, 16, 16), dtype=jnp.float32)
    gt2 = jax.random.normal(k4, (3, 1, 16, 16), dtype=jnp.float32)
    loss2 = jax.block_until_ready(
        tv_loss(out2, gt2, weight=weight, target_tile_bytes=2 * 16 * 512))
    ref2 = _tv_loss_ref(out2, gt2, weight=weight)
    assert jnp.allclose(loss2, ref2, rtol=1e-5, atol=1e-5), (loss2, ref2)

    # Exercise the row-tiling + seam path (single slab larger than the budget).
    out3 = jax.random.normal(k1, (1, 2, 20, 16), dtype=jnp.float32)
    gt3 = jax.random.normal(k2, (1, 2, 20, 16), dtype=jnp.float32)
    loss3 = jax.block_until_ready(
        tv_loss(out3, gt3, weight=0.5, target_tile_bytes=8 * 512))
    ref3 = _tv_loss_ref(out3, gt3, weight=0.5)
    assert jnp.allclose(loss3, ref3, rtol=1e-5, atol=1e-5), (loss3, ref3)

    print("KERNEL_OK")
</pallas_src>

<mosaic_0001>
module attributes {stable_mosaic.version = 11 : i64} {
  func.func @_tv_kernel(%arg0: i32, %arg1: i32, %arg2: memref<8x16x16xf32, #tpu.memory_space<vmem>>, %arg3: memref<8x16x16xf32, #tpu.memory_space<vmem>>, %arg4: memref<1x2xf32, #tpu.memory_space<smem>>) attributes {dimension_semantics = [#tpu.dimension_semantics<parallel>, #tpu.dimension_semantics<parallel>], iteration_bounds = array<i64: 1, 1>, scalar_prefetch = 0 : i64, scratch_operands = 0 : i64, tpu.core_type = #tpu.core_type<tc>, window_params = [{transform_indices = @transform_0, window_bounds = array<i64: 8, 16, 16>}, {transform_indices = @transform_1, window_bounds = array<i64: 8, 16, 16>}, {transform_indices = @transform_2, window_bounds = array<i64: 1, 2>}]} {
    %c0 = arith.constant 0 : index
    %c0_0 = arith.constant 0 : index
    %c0_1 = arith.constant 0 : index
    %0 = vector.load %arg2[%c0, %c0_0, %c0_1] : memref<8x16x16xf32, #tpu.memory_space<vmem>>, vector<8x16x16xf32>
    %c0_2 = arith.constant 0 : index
    %c0_3 = arith.constant 0 : index
    %c0_4 = arith.constant 0 : index
    %1 = vector.load %arg3[%c0_2, %c0_3, %c0_4] : memref<8x16x16xf32, #tpu.memory_space<vmem>>, vector<8x16x16xf32>
    %2 = arith.subf %0, %1 : vector<8x16x16xf32>
    %3 = vector.extract_strided_slice %2 {offsets = [0, 0, 1], sizes = [8, 16, 15], strides = [1, 1, 1]} : vector<8x16x16xf32> to vector<8x16x15xf32>
    %4 = vector.extract_strided_slice %2 {offsets = [0, 0, 0], sizes = [8, 16, 15], strides = [1, 1, 1]} : vector<8x16x16xf32> to vector<8x16x15xf32>
    %5 = arith.subf %3, %4 : vector<8x16x15xf32>
    %6 = math.absf %5 : vector<8x16x15xf32>
    %7 = vector.extract_strided_slice %2 {offsets = [0, 1, 0], sizes = [8, 15, 16], strides = [1, 1, 1]} : vector<8x16x16xf32> to vector<8x15x16xf32>
    %8 = vector.extract_strided_slice %2 {offsets = [0, 0, 0], sizes = [8, 15, 16], strides = [1, 1, 1]} : vector<8x16x16xf32> to vector<8x15x16xf32>
    %9 = arith.subf %7, %8 : vector<8x15x16xf32>
    %10 = math.absf %9 : vector<8x15x16xf32>
    %cst = arith.constant dense<0.000000e+00> : vector<15xf32>
    %11 = vector.multi_reduction <add>, %6, %cst [0, 1] : vector<8x16x15xf32> to vector<15xf32>
    %cst_5 = arith.constant dense<0.000000e+00> : vector<16xf32>
    %12 = vector.multi_reduction <add>, %10, %cst_5 [0, 1] : vector<8x15x16xf32> to vector<16xf32>
    %13 = vector.shape_cast %11 : vector<15xf32> to vector<1x15xf32>
    %cst_6 = arith.constant dense<0.000000e+00> : vector<1xf32>
    %14 = vector.multi_reduction <add>, %13, %cst_6 [1] : vector<1x15xf32> to vector<1xf32>
    %15 = vector.shape_cast %14 : vector<1xf32> to vector<1x1xf32>
    %16 = vector.extract %15[0, 0] : f32 from vector<1x1xf32>
    %c0_7 = arith.constant 0 : index
    %c0_8 = arith.constant 0 : index
    %17 = memref.load %arg4[%c0_7, %c0_8] : memref<1x2xf32, #tpu.memory_space<smem>>
    memref.store %16, %arg4[%c0_7, %c0_8] : memref<1x2xf32, #tpu.memory_space<smem>>
    %18 = vector.shape_cast %12 : vector<16xf32> to vector<1x16xf32>
    %cst_9 = arith.constant dense<0.000000e+00> : vector<1xf32>
    %19 = vector.multi_reduction <add>, %18, %cst_9 [1] : vector<1x16xf32> to vector<1xf32>
    %20 = vector.shape_cast %19 : vector<1xf32> to vector<1x1xf32>
    %21 = vector.extract %20[0, 0] : f32 from vector<1x1xf32>
    %c0_10 = arith.constant 0 : index
    %c1 = arith.constant 1 : index
    %22 = memref.load %arg4[%c0_10, %c1] : memref<1x2xf32, #tpu.memory_space<smem>>
    memref.store %21, %arg4[%c0_10, %c1] : memref<1x2xf32, #tpu.memory_space<smem>>
    return
  }
  func.func @transform_0(%arg0: i32, %arg1: i32) -> (i32, i32, i32) {
    %c0_i32 = arith.constant 0 : i32
    %c0_i32_0 = arith.constant 0 : i32
    return %arg0, %arg1, %c0_i32 : i32, i32, i32
  }
  func.func @transform_1(%arg0: i32, %arg1: i32) -> (i32, i32, i32) {
    %c0_i32 = arith.constant 0 : i32
    %c0_i32_0 = arith.constant 0 : i32
    return %arg0, %arg1, %c0_i32 : i32, i32, i32
  }
  func.func @transform_2(%arg0: i32, %arg1: i32) -> (i32, i32) {
    %c1_i32 = arith.constant 1 : i32
    %0 = arith.muli %arg0, %c1_i32 : i32
    %1 = arith.addi %0, %arg1 : i32
    %c0_i32 = arith.constant 0 : i32
    %c0_i32_0 = arith.constant 0 : i32
    return %1, %c0_i32 : i32, i32
  }
}

</mosaic_0001>

<llo_original>
// kernel: tpu_custom_call.1
$region0: #{tpu_custom_call.1}
  #allocation0 [shape = 'u32[]', space=smem, size = 0x4, offset = 0x4, fixed_abs, tag = 'smem constant byte address 0x4 - core index']
  #allocation1 [shape = 'u32[144,128]{1,0:T(1,128)}', space=vmem, size = 0x12000, scoped, tag = 'internal scratch']
  %s0 = inlined_call_operand.hbm [shape: f32[8,16,16], index: 0, kind: input, shape index: {}]
  %s1 = inlined_call_operand.hbm [shape: f32[8,16,16], index: 1, kind: input, shape index: {}]
  %s2 = inlined_call_operand.hbm [shape: f32[1,2], index: 2, kind: output, shape index: {}]
  %s3 = sld [smem:[#allocation0]]
  $region26: #{tpu_custom_call.1} parent=0
    _
  %s5 = ssub.s32 1, %s3
  %s6 = scalar_select 0, %s5, %s3
  $region1: #{tpu_custom_call.1} parent=0
    #allocation2 [shape = 'u8[65536]{0}', space=vmem, size = 0x10000, scoped, tag = 'input window, operand 0, single buffered']
    #allocation3 [shape = 's32[1]{0}', space=sflag, size = 0x4, scoped, tag = 'scoped memory for tpu_custom_call.1']
    #allocation4 [shape = 's32[1]{0}', space=sflag, size = 0x4, scoped, tag = 'scoped memory for tpu_custom_call.1']
    #allocation5 [shape = 'u8[65536]{0}', space=vmem, size = 0x10000, scoped, tag = 'input window, operand 1, single buffered']
    #allocation6 [shape = 's32[1]{0}', space=sflag, size = 0x4, scoped, tag = 'scoped memory for tpu_custom_call.1']
    #allocation7 [shape = 'u8[512]{0}', space=smem, size = 0x200, scoped, tag = 'output window, operand 0, single buffered']
    %7 = vsyncpa [#allocation3], 0
    %8 = vsyncpa [#allocation6], 0
    %9 = vsyncpa [#allocation4], 0
    // Predicated region
    $region2: #{tpu_custom_call.1} parent=1 // pred_check
      _
    $region3: #{tpu_custom_call.1} parent=1 // pred_check_branch
      %11 = sbr.rel (0) target = $region5
    $region4: #{tpu_custom_call.1} parent=1 // pred_region
      %s13 = ssub.s32 2048, 2048
      %14 = vsyncadd [#allocation3], %s13
      %s15 = sshll.u32 [#allocation2], 4
      %s16 = int_to_ptr.vmem [resolvable:$true] %s15
      %21 = dma.hbm_to_vmem [thread:$0]  %s0, 2048, %s16, [#allocation3], 128, 128, 8
    $region5: #{tpu_custom_call.1} parent=1 // pred_fallthru
      _
    // Predicated region
    $region6: #{tpu_custom_call.1} parent=1 // pred_check
      _
    $region7: #{tpu_custom_call.1} parent=1 // pred_check_branch
      %23 = sbr.rel (0) target = $region9
    $region8: #{tpu_custom_call.1} parent=1 // pred_region
      %s25 = ssub.s32 2048, 2048
      %26 = vsyncadd [#allocation6], %s25
      %s27 = sshll.u32 [#allocation5], 4
      %s28 = int_to_ptr.vmem [resolvable:$true] %s27
      %33 = dma.hbm_to_vmem [thread:$0]  %s1, 2048, %s28, [#allocation6], 128, 128, 8
    $region9: #{tpu_custom_call.1} parent=1 // pred_fallthru
      _
    // Predicated region
    $region10: #{tpu_custom_call.1} parent=1 // pred_check
      _
    $region11: #{tpu_custom_call.1} parent=1 // pred_check_branch
      %35 = sbr.rel (0) target = $region13
    $region12: #{tpu_custom_call.1} parent=1 // pred_region
      %36 = dma.done [#allocation3], 2048
    $region13: #{tpu_custom_call.1} parent=1 // pred_fallthru
      _
    // Predicated region
    $region14: #{tpu_custom_call.1} parent=1 // pred_check
      _
    $region15: #{tpu_custom_call.1} parent=1 // pred_check_branch
      %38 = sbr.rel (0) target = $region17
    $region16: #{tpu_custom_call.1} parent=1 // pred_region
      %39 = dma.done [#allocation6], 2048
    $region17: #{tpu_custom_call.1} parent=1 // pred_fallthru
      _
    %s40 = sadd.s32 0, 0
    %v41 = vld [vmem:[#allocation2] sm:$0xff]
    %v42 = vld [vmem:[#allocation2 + $0x8] sm:$0xff]
    %v43 = vld [vmem:[#allocation2 + $0x10] sm:$0xff]
    %v44 = vld [vmem:[#allocation2 + $0x18] sm:$0xff]
    %v45 = vld [vmem:[#allocation2 + $0x20] sm:$0xff]
    %v46 = vld [vmem:[#allocation2 + $0x28] sm:$0xff]
    %v47 = vld [vmem:[#allocation2 + $0x30] sm:$0xff]
    %v48 = vld [vmem:[#allocation2 + $0x38] sm:$0xff]
    %v49 = vld [vmem:[#allocation2 + $0x40] sm:$0xff]
    %v50 = vld [vmem:[#allocation2 + $0x48] sm:$0xff]
    %v51 = vld [vmem:[#allocation2 + $0x50] sm:$0xff]
    %v52 = vld [vmem:[#allocation2 + $0x58] sm:$0xff]
    %v53 = vld [vmem:[#allocation2 + $0x60] sm:$0xff]
    %v54 = vld [vmem:[#allocation2 + $0x68] sm:$0xff]
    %v55 = vld [vmem:[#allocation2 + $0x70] sm:$0xff]
    %v56 = vld [vmem:[#allocation2 + $0x78] sm:$0xff]
    %v57 = vld [vmem:[#allocation5] sm:$0xff]
    %v58 = vld [vmem:[#allocation5 + $0x8] sm:$0xff]
    %v59 = vld [vmem:[#allocation5 + $0x10] sm:$0xff]
    %v60 = vld [vmem:[#allocation5 + $0x18] sm:$0xff]
    %v61 = vld [vmem:[#allocation5 + $0x20] sm:$0xff]
    %v62 = vld [vmem:[#allocation5 + $0x28] sm:$0xff]
    %v63 = vld [vmem:[#allocation5 + $0x30] sm:$0xff]
    %v64 = vld [vmem:[#allocation5 + $0x38] sm:$0xff]
    %v65 = vld [vmem:[#allocation5 + $0x40] sm:$0xff]
    %v66 = vld [vmem:[#allocation5 + $0x48] sm:$0xff]
    %v67 = vld [vmem:[#allocation5 + $0x50] sm:$0xff]
    %v68 = vld [vmem:[#allocation5 + $0x58] sm:$0xff]
    %v69 = vld [vmem:[#allocation5 + $0x60] sm:$0xff]
    %v70 = vld [vmem:[#allocation5 + $0x68] sm:$0xff]
    %v71 = vld [vmem:[#allocation5 + $0x70] sm:$0xff]
    %v72 = vld [vmem:[#allocation5 + $0x78] sm:$0xff]
    %v73 = vsub.f32 %v41, %v57
    %v74 = vsub.f32 %v42, %v58
    %v75 = vsub.f32 %v43, %v59
    %v76 = vsub.f32 %v44, %v60
    %v77 = vsub.f32 %v45, %v61
    %v78 = vsub.f32 %v46, %v62
    %v79 = vsub.f32 %v47, %v63
    %v80 = vsub.f32 %v48, %v64
    %v81 = vsub.f32 %v49, %v65
    %v82 = vsub.f32 %v50, %v66
    %v83 = vsub.f32 %v51, %v67
    %v84 = vsub.f32 %v52, %v68
    %v85 = vsub.f32 %v53, %v69
    %v86 = vsub.f32 %v54, %v70
    %v87 = vsub.f32 %v55, %v71
    %v88 = vsub.f32 %v56, %v72
    %105 = vrot.lane.b32.xlu0 %v73, 1
    %v106 = vpop.permute.xlu0 %105
    %107 = vrot.lane.b32.xlu0 %v74, 1
    %v108 = vpop.permute.xlu0 %107
    %109 = vrot.lane.b32.xlu0 %v75, 1
    %v110 = vpop.permute.xlu0 %109
    %111 = vrot.lane.b32.xlu0 %v76, 1
    %v112 = vpop.permute.xlu0 %111
    %113 = vrot.lane.b32.xlu0 %v77, 1
    %v114 = vpop.permute.xlu0 %113
    %115 = vrot.lane.b32.xlu0 %v78, 1
    %v116 = vpop.permute.xlu0 %115
    %117 = vrot.lane.b32.xlu0 %v79, 1
    %v118 = vpop.permute.xlu0 %117
    %119 = vrot.lane.b32.xlu0 %v80, 1
    %v120 = vpop.permute.xlu0 %119
    %121 = vrot.lane.b32.xlu0 %v81, 1
    %v122 = vpop.permute.xlu0 %121
    %123 = vrot.lane.b32.xlu0 %v82, 1
    %v124 = vpop.permute.xlu0 %123
    %125 = vrot.lane.b32.xlu0 %v83, 1
    %v126 = vpop.permute.xlu0 %125
    %127 = vrot.lane.b32.xlu0 %v84, 1
    %v128 = vpop.permute.xlu0 %127
    %129 = vrot.lane.b32.xlu0 %v85, 1
    %v130 = vpop.permute.xlu0 %129
    %131 = vrot.lane.b32.xlu0 %v86, 1
    %v132 = vpop.permute.xlu0 %131
    %133 = vrot.lane.b32.xlu0 %v87, 1
    %v134 = vpop.permute.xlu0 %133
    %135 = vrot.lane.b32.xlu0 %v88, 1
    %v136 = vpop.permute.xlu0 %135
    %v153 = vsub.f32 %v73, %v106
    %v154 = vsub.f32 %v74, %v108
    %v155 = vsub.f32 %v75, %v110
    %v156 = vsub.f32 %v76, %v112
    %v157 = vsub.f32 %v77, %v114
    %v158 = vsub.f32 %v78, %v116
    %v159 = vsub.f32 %v79, %v118
    %v160 = vsub.f32 %v80, %v120
    %v161 = vsub.f32 %v81, %v122
    %v162 = vsub.f32 %v82, %v124
    %v163 = vsub.f32 %v83, %v126
    %v164 = vsub.f32 %v84, %v128
    %v165 = vsub.f32 %v85, %v130
    %v166 = vsub.f32 %v86, %v132
    %v167 = vsub.f32 %v87, %v134
    %v168 = vsub.f32 %v88, %v136
    %v169 = vand.u32 2147483647, %v153
    %v170 = vand.u32 2147483647, %v154
    %v171 = vand.u32 2147483647, %v155
    %v172 = vand.u32 2147483647, %v156
    %v173 = vand.u32 2147483647, %v157
    %v174 = vand.u32 2147483647, %v158
    %v175 = vand.u32 2147483647, %v159
    %v176 = vand.u32 2147483647, %v160
    %v177 = vand.u32 2147483647, %v161
    %v178 = vand.u32 2147483647, %v162
    %v179 = vand.u32 2147483647, %v163
    %v180 = vand.u32 2147483647, %v164
    %v181 = vand.u32 2147483647, %v165
    %v182 = vand.u32 2147483647, %v166
    %v183 = vand.u32 2147483647, %v167
    %v184 = vand.u32 2147483647, %v168
    %vm185 = vcmask 1040384
    %v186 = vrot.slane %v73, 7
    %v187 = vrot.slane %v74, 7
    %v188 = vsel %vm185, %v186, %v187
    %v189 = vrot.slane %v75, 7
    %v190 = vrot.slane %v76, 7
    %v191 = vsel %vm185, %v189, %v190
    %v192 = vrot.slane %v77, 7
    %v193 = vrot.slane %v78, 7
    %v194 = vsel %vm185, %v192, %v193
    %v195 = vrot.slane %v79, 7
    %v196 = vrot.slane %v80, 7
    %v197 = vsel %vm185, %v195, %v196
    %v198 = vrot.slane %v81, 7
    %v199 = vrot.slane %v82, 7
    %v200 = vsel %vm185, %v198, %v199
    %v201 = vrot.slane %v83, 7
    %v202 = vrot.slane %v84, 7
    %v203 = vsel %vm185, %v201, %v202
    %v204 = vrot.slane %v85, 7
    %v205 = vrot.slane %v86, 7
    %v206 = vsel %vm185, %v204, %v205
    %v207 = vrot.slane %v87, 7
    %v208 = vrot.slane %v88, 7
    %v209 = vsel %vm185, %v207, %v208
    %v226 = vsub.f32 %v73, %v186
    %v227 = vsub.f32 %v74, %v188
    %v228 = vsub.f32 %v75, %v189
    %v229 = vsub.f32 %v76, %v191
    %v230 = vsub.f32 %v77, %v192
    %v231 = vsub.f32 %v78, %v194
    %v232 = vsub.f32 %v79, %v195
    %v233 = vsub.f32 %v80, %v197
    %v234 = vsub.f32 %v81, %v198
    %v235 = vsub.f32 %v82, %v200
    %v236 = vsub.f32 %v83, %v201
    %v237 = vsub.f32 %v84, %v203
    %v238 = vsub.f32 %v85, %v204
    %v239 = vsub.f32 %v86, %v206
    %v240 = vsub.f32 %v87, %v207
    %v241 = vsub.f32 %v88, %v209
    %v242 = vand.u32 2147483647, %v226
    %v243 = vand.u32 2147483647, %v227
    %v244 = vand.u32 2147483647, %v228
    %v245 = vand.u32 2147483647, %v229
    %v246 = vand.u32 2147483647, %v230
    %v247 = vand.u32 2147483647, %v231
    %v248 = vand.u32 2147483647, %v232
    %v249 = vand.u32 2147483647, %v233
    %v250 = vand.u32 2147483647, %v234
    %v251 = vand.u32 2147483647, %v235
    %v252 = vand.u32 2147483647, %v236
    %v253 = vand.u32 2147483647, %v237
    %v254 = vand.u32 2147483647, %v238
    %v255 = vand.u32 2147483647, %v239
    %v256 = vand.u32 2147483647, %v240
    %v257 = vand.u32 2147483647, %v241
    %vm258 = vcmask 130056
    %v259 = vsel %vm258, %v169, 0.0
    %v260 = vsel %vm258, %v170, 0.0
    %v261 = vadd.f32 %v259, %v260
    %v262 = vsel %vm258, %v171, 0.0
    %v263 = vadd.f32 %v261, %v262
    %v264 = vsel %vm258, %v172, 0.0
    %v265 = vadd.f32 %v263, %v264
    %v266 = vsel %vm258, %v173, 0.0
    %v267 = vadd.f32 %v265, %v266
    %v268 = vsel %vm258, %v174, 0.0
    %v269 = vadd.f32 %v267, %v268
    %v270 = vsel %vm258, %v175, 0.0
    %v271 = vadd.f32 %v269, %v270
    %v272 = vsel %vm258, %v176, 0.0
    %v273 = vadd.f32 %v271, %v272
    %v274 = vsel %vm258, %v177, 0.0
    %v275 = vadd.f32 %v273, %v274
    %v276 = vsel %vm258, %v178, 0.0
    %v277 = vadd.f32 %v275, %v276
    %v278 = vsel %vm258, %v179, 0.0
    %v279 = vadd.f32 %v277, %v278
    %v280 = vsel %vm258, %v180, 0.0
    %v281 = vadd.f32 %v279, %v280
    %v282 = vsel %vm258, %v181, 0.0
    %v283 = vadd.f32 %v281, %v282
    %v284 = vsel %vm258, %v182, 0.0
    %v285 = vadd.f32 %v283, %v284
    %v286 = vsel %vm258, %v183, 0.0
    %v287 = vadd.f32 %v285, %v286
    %v288 = vsel %vm258, %v184, 0.0
    %v289 = vadd.f32 %v287, %v288
    %v290 = vrot.slane %v289, 4
    %v291 = vadd.f32 %v289, %v290
    %v292 = vrot.slane %v291, 2
    %v293 = vadd.f32 %v291, %v292
    %v294 = vrot.slane %v293, 1
    %v295 = vadd.f32 %v293, %v294
    %vm312 = vcmask 1046528
    %v313 = vrot.slane %v242, 1
    %v314 = vrot.slane %v243, 1
    %v315 = vsel %vm312, %v313, %v314
    %v316 = vrot.slane %v244, 1
    %v317 = vrot.slane %v245, 1
    %v318 = vsel %vm312, %v316, %v317
    %v319 = vrot.slane %v246, 1
    %v320 = vrot.slane %v247, 1
    %v321 = vsel %vm312, %v319, %v320
    %v322 = vrot.slane %v248, 1
    %v323 = vrot.slane %v249, 1
    %v324 = vsel %vm312, %v322, %v323
    %v325 = vrot.slane %v250, 1
    %v326 = vrot.slane %v251, 1
    %v327 = vsel %vm312, %v325, %v326
    %v328 = vrot.slane %v252, 1
    %v329 = vrot.slane %v253, 1
    %v330 = vsel %vm312, %v328, %v329
    %v331 = vrot.slane %v254, 1
    %v332 = vrot.slane %v255, 1
    %v333 = vsel %vm312, %v331, %v332
    %v334 = vrot.slane %v256, 1
    %v335 = vrot.slane %v257, 1
    %v336 = vsel %vm312, %v334, %v335
    %vm353 = vcmask 130048
    %v354 = vsel %vm353, %v315, 0.0
    %vm355 = vcmask 129024
    %v356 = vsel %vm355, %v314, 0.0
    %v357 = vadd.f32 %v354, %v356
    %v358 = vsel %vm353, %v318, 0.0
    %v359 = vadd.f32 %v357, %v358
    %v360 = vsel %vm355, %v317, 0.0
    %v361 = vadd.f32 %v359, %v360
    %v362 = vsel %vm353, %v321, 0.0
    %v363 = vadd.f32 %v361, %v362
    %v364 = vsel %vm355, %v320, 0.0
    %v365 = vadd.f32 %v363, %v364
    %v366 = vsel %vm353, %v324, 0.0
    %v367 = vadd.f32 %v365, %v366
    %v368 = vsel %vm355, %v323, 0.0
    %v369 = vadd.f32 %v367, %v368
    %v370 = vsel %vm353, %v327, 0.0
    %v371 = vadd.f32 %v369, %v370
    %v372 = vsel %vm355, %v326, 0.0
    %v373 = vadd.f32 %v371, %v372
    %v374 = vsel %vm353, %v330, 0.0
    %v375 = vadd.f32 %v373, %v374
    %v376 = vsel %vm355, %v329, 0.0
    %v377 = vadd.f32 %v375, %v376
    %v378 = vsel %vm353, %v333, 0.0
    %v379 = vadd.f32 %v377, %v378
    %v380 = vsel %vm355, %v332, 0.0
    %v381 = vadd.f32 %v379, %v380
    %v382 = vsel %vm353, %v336, 0.0
    %v383 = vadd.f32 %v381, %v382
    %v384 = vsel %vm355, %v335, 0.0
    %v385 = vadd.f32 %v383, %v384
    %v386 = vrot.slane %v385, 4
    %v387 = vadd.f32 %v385, %v386
    %v388 = vrot.slane %v387, 2
    %v389 = vadd.f32 %v387, %v388
    %v390 = vrot.slane %v389, 1
    %v391 = vadd.f32 %v389, %v390
    %393 = vrot.lane.b32.xlu0 %v295, 127
    %v394 = vpop.permute.xlu0 %393
    %vm396 = vcmask 121856
    %v397 = vsel %vm396, %v394, 0.0
    %398 = vadd.xlane.f32.xlu0 %v397
    %v399 = vpop.xlane.xlu0 %398
    %s400 = vtos %v399
    %s401 = scalar_lea.smem [#allocation7], 0
    %402 = sst [smem:[%s401]] %s400
    %v403 = vsel %vm353, %v391, 0.0
    %404 = vadd.xlane.f32.xlu0 %v403
    %v405 = vpop.xlane.xlu0 %404
    %s406 = vtos %v405
    %s407 = scalar_lea.smem [#allocation7], 1
    %408 = sst [smem:[%s407]] %s406
    // Predicated region
    $region18: #{tpu_custom_call.1} parent=1 // pred_check
      _
    $region19: #{tpu_custom_call.1} parent=1 // pred_check_branch
      %410 = sbr.rel (0) target = $region21
    $region20: #{tpu_custom_call.1} parent=1 // pred_region
      %s411 = sadd.s32 0, 0
      %s413 = ssub.s32 16, 16
      %414 = vsyncadd [#allocation4], %s413
      %s415 = smul.addr %s411, 16
      %s416 = scalar_lea.hbm %s2, %s415
      %419 = dma.smem_to_hbm [#allocation7], 16, %s416, [#allocation4]
    $region21: #{tpu_custom_call.1} parent=1 // pred_fallthru
      _
    // Predicated region
    $region22: #{tpu_custom_call.1} parent=1 // pred_check
      _
    $region23: #{tpu_custom_call.1} parent=1 // pred_check_branch
      %421 = sbr.rel (0) target = $region25
    $region24: #{tpu_custom_call.1} parent=1 // pred_region
      %422 = dma.done [#allocation4], 16
    $region25: #{tpu_custom_call.1} parent=1 // pred_fallthru
      _
    %423 = sfence
    %424 = vsyncpa [#allocation3], 1
    %425 = vsyncpa [#allocation6], 1
    %426 = vsyncpa [#allocation4], 1

</llo_original>
